<compile_context>
chip_gen: v7x
topology: tpu7x:2x2x1
jax: 0.10.0
libtpu: 0.0.40
codegen_flags: <defaults>
</compile_context>

<pallas_src>
import functools
import math

import jax
import jax.numpy as jnp
from jax import lax
from jax.experimental import pallas as pl
from jax.experimental.pallas import tpu as pltpu


def _selfattn_cope_kernel(q_ref, k_ref, v_ref, pe_ref, o_ref, *, npos_max):
    # Per-grid-step tiles: q is (1, TQ, D); k/v are (1, S, D); pe is (D, N).
    q = q_ref[0]                                   # (TQ, D), native dtype (MXU input)
    k = k_ref[0]                                   # (S,  D)
    v = v_ref[0]                                   # (S,  D)
    pe = pe_ref[...]                               # (D,  N)

    TQ, D = q.shape
    S = k.shape[0]
    scale = 1.0 / math.sqrt(D)

    # Fold 1/sqrt(d) into q: TQ*D multiplies instead of TQ*S on the logits.
    q_scaled = q * scale

    # attn_logits = (q/sqrt(d)) @ k^T : (TQ, S).  Contract the last dims with
    # dot_general so the resident key block is never explicitly transposed.
    attn_logits = lax.dot_general(
        q_scaled, k,
        dimension_numbers=(((1,), (1,)), ((), ())),
        preferred_element_type=jnp.float32)

    # ---- CoPE ----
    # sigmoid(x) == 0.5*(tanh(x/2)+1): one EUP transcendental per element.
    gates = 0.5 * (jnp.tanh(0.5 * attn_logits) + 1.0)   # (TQ, S) f32

    # Reverse cumulative sum along the kv axis:
    #   pos[i, j] = sum_{m >= j} gates[i, m]
    # Hillis-Steele suffix scan (log2(S) steps).  When S is lane-aligned the
    # shift runs on the XLU via pltpu.roll with a hoisted iota mask; otherwise
    # (small / odd S) fall back to concatenate.
    use_roll = (S % 128 == 0)
    if use_roll:
        col = lax.broadcasted_iota(jnp.int32, (TQ, S), 1)   # hoisted once
    pos = gates
    off = 1
    while off < S:
        if use_roll:
            # out[:, j] = pos[:, (j + off) mod S]; wrap-around is masked to 0.
            rolled = pltpu.roll(pos, shift=S - off, axis=1)
            shifted = jnp.where(col < S - off, rolled, 0.0)
        else:
            shifted = jnp.concatenate(
                [pos[:, off:], jnp.zeros((TQ, off), jnp.float32)], axis=1)
        pos = pos + shifted
        off *= 2

    pos = jnp.minimum(pos, float(npos_max - 1))    # clamp(max=npos_max - 1)

    # logits_int = q @ pos_emb : (TQ, N).  Unscaled q, matching the reference.
    logits_int = jnp.dot(q, pe, preferred_element_type=jnp.float32)

    # Floor/ceil gather + linear interpolation as a select-chain:
    #   pf = floor(pos), w = pos - pf
    #   L_floor = logits_int[:, pf], L_ceil = logits_int[:, min(pf+1, N-1)]
    #   cope = (1-w)*L_floor + w*L_ceil
    # (When pos is an exact integer, w == 0 so the clamped ceil column is
    # irrelevant — identical to the gather-based reference.)
    pf = jnp.floor(pos)                            # (TQ, S), exact small ints
    w = pos - pf                                   # (TQ, S) in [0, 1)
    l_floor = jnp.zeros((TQ, S), jnp.float32)
    l_ceil = jnp.zeros((TQ, S), jnp.float32)
    for n in range(npos_max):
        is_n = pf == float(n)
        col_f = logits_int[:, n:n + 1]             # (TQ, 1)
        nc = min(n + 1, npos_max - 1)
        col_c = logits_int[:, nc:nc + 1]           # (TQ, 1)
        l_floor = jnp.where(is_n, col_f, l_floor)
        l_ceil = jnp.where(is_n, col_c, l_ceil)
    cope = (1.0 - w) * l_floor + w * l_ceil

    # ---- softmax(attn_logits + cope) and output projection ----
    logits = attn_logits + cope
    m = jnp.max(logits, axis=-1, keepdims=True)
    p = jnp.exp(logits - m)
    denom = jnp.sum(p, axis=-1, keepdims=True)     # (TQ, 1)
    inv = pl.reciprocal(denom, approx=True)        # EUP reciprocal
    inv = inv * (2.0 - denom * inv)                # one Newton step -> ~f32 exact
    attn = p * inv

    out = jnp.dot(attn.astype(v.dtype), v, preferred_element_type=jnp.float32)
    o_ref[0] = out.astype(o_ref.dtype)


def _default_vmem_limit_bytes():
    """Per-generation scoped-VMEM cap: ~48 MiB on v7x (64 MiB physical),
    64 MiB on v5e/v6e (128 MiB physical), 32 MiB if the query fails."""
    try:
        cap = pltpu.get_tpu_info().vmem_capacity_bytes
        return int(min(64 * 1024 * 1024, (3 * cap) // 4))
    except Exception:
        return 32 * 1024 * 1024


def _choose_q_tile(S, D, itemsize, q_tile, vmem_limit_bytes):
    """Largest divisor of S that is a multiple of 8, <= q_tile, and whose
    estimated footprint fits the VMEM budget.  Never falls back to a huge
    TQ = S for non-divisible S (that was the old VMEM cliff)."""
    cands = [t for t in range(8, min(q_tile, S) + 1, 8) if S % t == 0]
    if not cands:
        # Tiny / odd S only: a block equal to the full axis is always legal.
        return S

    def footprint(tq):
        # ~8 live (TQ, S) f32 temporaries + double-buffered resident k/v.
        return 8 * tq * S * 4 + 4 * S * D * itemsize

    budget = int(0.75 * vmem_limit_bytes)
    for t in sorted(cands, reverse=True):
        if footprint(t) <= budget:
            return t
    return min(cands)


def self_attn_cope(query, key, val, pos_emb, npos_max, *, q_tile=256,
                   vmem_limit_bytes=None):
    """query/key/val: [B, S, D] ; pos_emb: [D, Npos] ; returns [B, S, D]."""
    B, S, D = query.shape
    N = pos_emb.shape[1]
    assert N == npos_max, "pos_emb last dim must equal npos_max"

    if vmem_limit_bytes is None:
        vmem_limit_bytes = _default_vmem_limit_bytes()

    TQ = _choose_q_tile(S, D, query.dtype.itemsize, q_tile, vmem_limit_bytes)
    num_q_tiles = S // TQ

    kernel = functools.partial(_selfattn_cope_kernel, npos_max=npos_max)
    return pl.pallas_call(
        kernel,
        out_shape=jax.ShapeDtypeStruct((B, S, D), query.dtype),
        grid=(B, num_q_tiles),
        in_specs=[
            pl.BlockSpec((1, TQ, D), lambda b, qi: (b, qi, 0)),   # q tile
            pl.BlockSpec((1, S, D), lambda b, qi: (b, 0, 0)),     # full k (resident)
            pl.BlockSpec((1, S, D), lambda b, qi: (b, 0, 0)),     # full v (resident)
            pl.BlockSpec((D, N), lambda b, qi: (0, 0)),           # pos_emb (resident)
        ],
        out_specs=pl.BlockSpec((1, TQ, D), lambda b, qi: (b, qi, 0)),
        compiler_params=pltpu.CompilerParams(
            # Both grid axes are independent -> megacore sharding (v7x: 2 TCs).
            dimension_semantics=("parallel", "parallel"),
            vmem_limit_bytes=vmem_limit_bytes,
        ),
    )(query, key, val, pos_emb)


def _reference(query, key, val, pos_emb, npos_max):
    """Pure-JAX mirror of the PyTorch forward (mask=None), for validation."""
    d = query.shape[-1]
    attn_logits = jnp.einsum("bid,bjd->bij", query, key) / math.sqrt(d)
    gates = jax.nn.sigmoid(attn_logits)
    pos = jnp.flip(jnp.cumsum(jnp.flip(gates, -1), -1), -1)
    pos = jnp.minimum(pos, npos_max - 1)
    pos_ceil = jnp.ceil(pos).astype(jnp.int32)
    pos_floor = jnp.floor(pos).astype(jnp.int32)
    logits_int = jnp.einsum("bid,dn->bin", query, pos_emb)
    logits_ceil = jnp.take_along_axis(logits_int, pos_ceil, axis=-1)
    logits_floor = jnp.take_along_axis(logits_int, pos_floor, axis=-1)
    w = pos - pos_floor
    cope = logits_ceil * w + logits_floor * (1.0 - w)
    attn = jax.nn.softmax(attn_logits + cope, axis=-1)
    return jnp.einsum("bij,bjd->bid", attn, val)


def _run_case(B, S, D, npos_max, seed):
    k0 = jax.random.PRNGKey(seed)
    kq, kk, kv, kp = jax.random.split(k0, 4)
    query = jax.random.normal(kq, (B, S, D), dtype=jnp.float32)
    key_ = jax.random.normal(kk, (B, S, D), dtype=jnp.float32)
    val = jax.random.normal(kv, (B, S, D), dtype=jnp.float32)
    # PyTorch inits pos_emb to zeros([1, D, Npos]); use small deterministic
    # random values instead so the CoPE path is actually exercised.
    pos_emb = 0.02 * jax.random.normal(kp, (D, npos_max), dtype=jnp.float32)

    out = self_attn_cope(query, key_, val, pos_emb, npos_max)
    out = jax.block_until_ready(out)

    ref = _reference(query, key_, val, pos_emb, npos_max)
    assert out.shape == (B, S, D)
    # Slightly loose tolerance: tanh-form sigmoid, suffix-scan accumulation
    # order and the Newton-refined EUP reciprocal differ by a few ulps.
    assert jnp.allclose(out, ref, atol=1e-3, rtol=1e-3), (
        f"max abs diff = {jnp.max(jnp.abs(out - ref))}"
    )


if __name__ == "__main__":
    # Small spec-sized case (S=8 exercises the concat fallback of the scan).
    _run_case(B=2, S=8, D=32, npos_max=8, seed=0)
    # Larger lane-aligned case (exercises the pltpu.roll scan and q-tiling).
    _run_case(B=2, S=256, D=64, npos_max=8, seed=0)
    print("KERNEL_OK")
</pallas_src>

<mosaic_0001>
module attributes {stable_mosaic.version = 11 : i64} {
  func.func @_selfattn_cope_kernel(%arg0: i32, %arg1: i32, %arg2: memref<1x8x32xf32, #tpu.memory_space<vmem>>, %arg3: memref<1x8x32xf32, #tpu.memory_space<vmem>>, %arg4: memref<1x8x32xf32, #tpu.memory_space<vmem>>, %arg5: memref<32x8xf32, #tpu.memory_space<vmem>>, %arg6: memref<1x8x32xf32, #tpu.memory_space<vmem>>) attributes {dimension_semantics = [#tpu.dimension_semantics<parallel>, #tpu.dimension_semantics<parallel>], iteration_bounds = array<i64: 2, 1>, scalar_prefetch = 0 : i64, scratch_operands = 0 : i64, tpu.core_type = #tpu.core_type<tc>, window_params = [{transform_indices = @transform_0, window_bounds = array<i64: 1, 8, 32>}, {transform_indices = @transform_1, window_bounds = array<i64: 1, 8, 32>}, {transform_indices = @transform_2, window_bounds = array<i64: 1, 8, 32>}, {pipeline_mode = #tpu.pipeline_mode<synchronous>, transform_indices = @transform_3, window_bounds = array<i64: 32, 8>}, {transform_indices = @transform_4, window_bounds = array<i64: 1, 8, 32>}]} {
    %c0 = arith.constant 0 : index
    %c0_0 = arith.constant 0 : index
    %c0_1 = arith.constant 0 : index
    %0 = vector.load %arg2[%c0, %c0_0, %c0_1] : memref<1x8x32xf32, #tpu.memory_space<vmem>>, vector<1x8x32xf32>
    %1 = vector.shape_cast %0 : vector<1x8x32xf32> to vector<8x32xf32>
    %c0_2 = arith.constant 0 : index
    %c0_3 = arith.constant 0 : index
    %c0_4 = arith.constant 0 : index
    %2 = vector.load %arg3[%c0_2, %c0_3, %c0_4] : memref<1x8x32xf32, #tpu.memory_space<vmem>>, vector<1x8x32xf32>
    %3 = vector.shape_cast %2 : vector<1x8x32xf32> to vector<8x32xf32>
    %c0_5 = arith.constant 0 : index
    %c0_6 = arith.constant 0 : index
    %c0_7 = arith.constant 0 : index
    %4 = vector.load %arg4[%c0_5, %c0_6, %c0_7] : memref<1x8x32xf32, #tpu.memory_space<vmem>>, vector<1x8x32xf32>
    %5 = vector.shape_cast %4 : vector<1x8x32xf32> to vector<8x32xf32>
    %c0_8 = arith.constant 0 : index
    %c0_9 = arith.constant 0 : index
    %6 = vector.load %arg5[%c0_8, %c0_9] : memref<32x8xf32, #tpu.memory_space<vmem>>, vector<32x8xf32>
    %cst = arith.constant 0.176776692 : f32
    %7 = vector.broadcast %cst : f32 to vector<8x32xf32>
    %8 = arith.mulf %1, %7 : vector<8x32xf32>
    %cst_10 = arith.constant dense<0.000000e+00> : vector<8x8xf32>
    %9 = tpu.matmul %8, %3, %cst_10 {dimension_numbers = #tpu.dot_dimension_numbers<[1], [1], [0], [0], [0, 0, 1, 0], [], []>} : vector<8x32xf32>, vector<8x32xf32>, vector<8x8xf32> -> vector<8x8xf32>
    %cst_11 = arith.constant 5.000000e-01 : f32
    %10 = vector.broadcast %cst_11 : f32 to vector<8x8xf32>
    %11 = arith.mulf %10, %9 : vector<8x8xf32>
    %12 = math.tanh %11 : vector<8x8xf32>
    %cst_12 = arith.constant 1.000000e+00 : f32
    %13 = vector.broadcast %cst_12 : f32 to vector<8x8xf32>
    %14 = arith.addf %12, %13 : vector<8x8xf32>
    %cst_13 = arith.constant 5.000000e-01 : f32
    %15 = vector.broadcast %cst_13 : f32 to vector<8x8xf32>
    %16 = arith.mulf %15, %14 : vector<8x8xf32>
    %17 = vector.extract_strided_slice %16 {offsets = [0, 1], sizes = [8, 7], strides = [1, 1]} : vector<8x8xf32> to vector<8x7xf32>
    %cst_14 = arith.constant 0.000000e+00 : f32
    %18 = vector.broadcast %cst_14 : f32 to vector<8x1xf32>
    %19 = tpu.concatenate %17, %18 in 1 : vector<8x7xf32>, vector<8x1xf32> -> vector<8x8xf32>
    %20 = arith.addf %16, %19 : vector<8x8xf32>
    %21 = vector.extract_strided_slice %20 {offsets = [0, 2], sizes = [8, 6], strides = [1, 1]} : vector<8x8xf32> to vector<8x6xf32>
    %cst_15 = arith.constant 0.000000e+00 : f32
    %22 = vector.broadcast %cst_15 : f32 to vector<8x2xf32>
    %23 = tpu.concatenate %21, %22 in 1 : vector<8x6xf32>, vector<8x2xf32> -> vector<8x8xf32>
    %24 = arith.addf %20, %23 : vector<8x8xf32>
    %25 = vector.extract_strided_slice %24 {offsets = [0, 4], sizes = [8, 4], strides = [1, 1]} : vector<8x8xf32> to vector<8x4xf32>
    %cst_16 = arith.constant 0.000000e+00 : f32
    %26 = vector.broadcast %cst_16 : f32 to vector<8x4xf32>
    %27 = tpu.concatenate %25, %26 in 1 : vector<8x4xf32>, vector<8x4xf32> -> vector<8x8xf32>
    %28 = arith.addf %24, %27 : vector<8x8xf32>
    %cst_17 = arith.constant 7.000000e+00 : f32
    %29 = vector.broadcast %cst_17 : f32 to vector<8x8xf32>
    %30 = arith.minimumf %28, %29 : vector<8x8xf32>
    %cst_18 = arith.constant dense<0.000000e+00> : vector<8x8xf32>
    %31 = tpu.matmul %1, %6, %cst_18 {dimension_numbers = #tpu.dot_dimension_numbers<[1], [0], [0], [1], [0, 0, 1, 1], [], []>} : vector<8x32xf32>, vector<32x8xf32>, vector<8x8xf32> -> vector<8x8xf32>
    %32 = math.floor %30 : vector<8x8xf32>
    %33 = arith.subf %30, %32 : vector<8x8xf32>
    %cst_19 = arith.constant 0.000000e+00 : f32
    %34 = vector.broadcast %cst_19 : f32 to vector<8x8xf32>
    %cst_20 = arith.constant 0.000000e+00 : f32
    %35 = vector.broadcast %cst_20 : f32 to vector<8x8xf32>
    %cst_21 = arith.constant 0.000000e+00 : f32
    %36 = vector.broadcast %cst_21 : f32 to vector<8x8xf32>
    %37 = arith.cmpf oeq, %32, %36 : vector<8x8xf32>
    %38 = vector.extract_strided_slice %31 {offsets = [0, 0], sizes = [8, 1], strides = [1, 1]} : vector<8x8xf32> to vector<8x1xf32>
    %39 = vector.extract_strided_slice %31 {offsets = [0, 1], sizes = [8, 1], strides = [1, 1]} : vector<8x8xf32> to vector<8x1xf32>
    %40 = vector.shape_cast %38 : vector<8x1xf32> to vector<8x1xf32>
    %41 = vector.broadcast %40 : vector<8x1xf32> to vector<8x8xf32>
    %42 = arith.select %37, %41, %34 : vector<8x8xi1>, vector<8x8xf32>
    %43 = vector.shape_cast %39 : vector<8x1xf32> to vector<8x1xf32>
    %44 = vector.broadcast %43 : vector<8x1xf32> to vector<8x8xf32>
    %45 = arith.select %37, %44, %35 : vector<8x8xi1>, vector<8x8xf32>
    %cst_22 = arith.constant 1.000000e+00 : f32
    %46 = vector.broadcast %cst_22 : f32 to vector<8x8xf32>
    %47 = arith.cmpf oeq, %32, %46 : vector<8x8xf32>
    %48 = vector.extract_strided_slice %31 {offsets = [0, 1], sizes = [8, 1], strides = [1, 1]} : vector<8x8xf32> to vector<8x1xf32>
    %49 = vector.extract_strided_slice %31 {offsets = [0, 2], sizes = [8, 1], strides = [1, 1]} : vector<8x8xf32> to vector<8x1xf32>
    %50 = vector.shape_cast %48 : vector<8x1xf32> to vector<8x1xf32>
    %51 = vector.broadcast %50 : vector<8x1xf32> to vector<8x8xf32>
    %52 = arith.select %47, %51, %42 : vector<8x8xi1>, vector<8x8xf32>
    %53 = vector.shape_cast %49 : vector<8x1xf32> to vector<8x1xf32>
    %54 = vector.broadcast %53 : vector<8x1xf32> to vector<8x8xf32>
    %55 = arith.select %47, %54, %45 : vector<8x8xi1>, vector<8x8xf32>
    %cst_23 = arith.constant 2.000000e+00 : f32
    %56 = vector.broadcast %cst_23 : f32 to vector<8x8xf32>
    %57 = arith.cmpf oeq, %32, %56 : vector<8x8xf32>
    %58 = vector.extract_strided_slice %31 {offsets = [0, 2], sizes = [8, 1], strides = [1, 1]} : vector<8x8xf32> to vector<8x1xf32>
    %59 = vector.extract_strided_slice %31 {offsets = [0, 3], sizes = [8, 1], strides = [1, 1]} : vector<8x8xf32> to vector<8x1xf32>
    %60 = vector.shape_cast %58 : vector<8x1xf32> to vector<8x1xf32>
    %61 = vector.broadcast %60 : vector<8x1xf32> to vector<8x8xf32>
    %62 = arith.select %57, %61, %52 : vector<8x8xi1>, vector<8x8xf32>
    %63 = vector.shape_cast %59 : vector<8x1xf32> to vector<8x1xf32>
    %64 = vector.broadcast %63 : vector<8x1xf32> to vector<8x8xf32>
    %65 = arith.select %57, %64, %55 : vector<8x8xi1>, vector<8x8xf32>
    %cst_24 = arith.constant 3.000000e+00 : f32
    %66 = vector.broadcast %cst_24 : f32 to vector<8x8xf32>
    %67 = arith.cmpf oeq, %32, %66 : vector<8x8xf32>
    %68 = vector.extract_strided_slice %31 {offsets = [0, 3], sizes = [8, 1], strides = [1, 1]} : vector<8x8xf32> to vector<8x1xf32>
    %69 = vector.extract_strided_slice %31 {offsets = [0, 4], sizes = [8, 1], strides = [1, 1]} : vector<8x8xf32> to vector<8x1xf32>
    %70 = vector.shape_cast %68 : vector<8x1xf32> to vector<8x1xf32>
    %71 = vector.broadcast %70 : vector<8x1xf32> to vector<8x8xf32>
    %72 = arith.select %67, %71, %62 : vector<8x8xi1>, vector<8x8xf32>
    %73 = vector.shape_cast %69 : vector<8x1xf32> to vector<8x1xf32>
    %74 = vector.broadcast %73 : vector<8x1xf32> to vector<8x8xf32>
    %75 = arith.select %67, %74, %65 : vector<8x8xi1>, vector<8x8xf32>
    %cst_25 = arith.constant 4.000000e+00 : f32
    %76 = vector.broadcast %cst_25 : f32 to vector<8x8xf32>
    %77 = arith.cmpf oeq, %32, %76 : vector<8x8xf32>
    %78 = vector.extract_strided_slice %31 {offsets = [0, 4], sizes = [8, 1], strides = [1, 1]} : vector<8x8xf32> to vector<8x1xf32>
    %79 = vector.extract_strided_slice %31 {offsets = [0, 5], sizes = [8, 1], strides = [1, 1]} : vector<8x8xf32> to vector<8x1xf32>
    %80 = vector.shape_cast %78 : vector<8x1xf32> to vector<8x1xf32>
    %81 = vector.broadcast %80 : vector<8x1xf32> to vector<8x8xf32>
    %82 = arith.select %77, %81, %72 : vector<8x8xi1>, vector<8x8xf32>
    %83 = vector.shape_cast %79 : vector<8x1xf32> to vector<8x1xf32>
    %84 = vector.broadcast %83 : vector<8x1xf32> to vector<8x8xf32>
    %85 = arith.select %77, %84, %75 : vector<8x8xi1>, vector<8x8xf32>
    %cst_26 = arith.constant 5.000000e+00 : f32
    %86 = vector.broadcast %cst_26 : f32 to vector<8x8xf32>
    %87 = arith.cmpf oeq, %32, %86 : vector<8x8xf32>
    %88 = vector.extract_strided_slice %31 {offsets = [0, 5], sizes = [8, 1], strides = [1, 1]} : vector<8x8xf32> to vector<8x1xf32>
    %89 = vector.extract_strided_slice %31 {offsets = [0, 6], sizes = [8, 1], strides = [1, 1]} : vector<8x8xf32> to vector<8x1xf32>
    %90 = vector.shape_cast %88 : vector<8x1xf32> to vector<8x1xf32>
    %91 = vector.broadcast %90 : vector<8x1xf32> to vector<8x8xf32>
    %92 = arith.select %87, %91, %82 : vector<8x8xi1>, vector<8x8xf32>
    %93 = vector.shape_cast %89 : vector<8x1xf32> to vector<8x1xf32>
    %94 = vector.broadcast %93 : vector<8x1xf32> to vector<8x8xf32>
    %95 = arith.select %87, %94, %85 : vector<8x8xi1>, vector<8x8xf32>
    %cst_27 = arith.constant 6.000000e+00 : f32
    %96 = vector.broadcast %cst_27 : f32 to vector<8x8xf32>
    %97 = arith.cmpf oeq, %32, %96 : vector<8x8xf32>
    %98 = vector.extract_strided_slice %31 {offsets = [0, 6], sizes = [8, 1], strides = [1, 1]} : vector<8x8xf32> to vector<8x1xf32>
    %99 = vector.extract_strided_slice %31 {offsets = [0, 7], sizes = [8, 1], strides = [1, 1]} : vector<8x8xf32> to vector<8x1xf32>
    %100 = vector.shape_cast %98 : vector<8x1xf32> to vector<8x1xf32>
    %101 = vector.broadcast %100 : vector<8x1xf32> to vector<8x8xf32>
    %102 = arith.select %97, %101, %92 : vector<8x8xi1>, vector<8x8xf32>
    %103 = vector.shape_cast %99 : vector<8x1xf32> to vector<8x1xf32>
    %104 = vector.broadcast %103 : vector<8x1xf32> to vector<8x8xf32>
    %105 = arith.select %97, %104, %95 : vector<8x8xi1>, vector<8x8xf32>
    %cst_28 = arith.constant 7.000000e+00 : f32
    %106 = vector.broadcast %cst_28 : f32 to vector<8x8xf32>
    %107 = arith.cmpf oeq, %32, %106 : vector<8x8xf32>
    %108 = vector.extract_strided_slice %31 {offsets = [0, 7], sizes = [8, 1], strides = [1, 1]} : vector<8x8xf32> to vector<8x1xf32>
    %109 = vector.extract_strided_slice %31 {offsets = [0, 7], sizes = [8, 1], strides = [1, 1]} : vector<8x8xf32> to vector<8x1xf32>
    %110 = vector.shape_cast %108 : vector<8x1xf32> to vector<8x1xf32>
    %111 = vector.broadcast %110 : vector<8x1xf32> to vector<8x8xf32>
    %112 = arith.select %107, %111, %102 : vector<8x8xi1>, vector<8x8xf32>
    %113 = vector.shape_cast %109 : vector<8x1xf32> to vector<8x1xf32>
    %114 = vector.broadcast %113 : vector<8x1xf32> to vector<8x8xf32>
    %115 = arith.select %107, %114, %105 : vector<8x8xi1>, vector<8x8xf32>
    %cst_29 = arith.constant 1.000000e+00 : f32
    %116 = vector.broadcast %cst_29 : f32 to vector<8x8xf32>
    %117 = arith.subf %116, %33 : vector<8x8xf32>
    %118 = arith.mulf %117, %112 : vector<8x8xf32>
    %119 = arith.mulf %33, %115 : vector<8x8xf32>
    %120 = arith.addf %118, %119 : vector<8x8xf32>
    %121 = arith.addf %9, %120 : vector<8x8xf32>
    %cst_30 = arith.constant dense<0xFF800000> : vector<8xf32>
    %122 = vector.multi_reduction <maximumf>, %121, %cst_30 [1] : vector<8x8xf32> to vector<8xf32>
    %123 = vector.shape_cast %122 : vector<8xf32> to vector<8x1xf32>
    %124 = vector.broadcast %123 : vector<8x1xf32> to vector<8x8xf32>
    %125 = arith.subf %121, %124 : vector<8x8xf32>
    %126 = math.exp %125 : vector<8x8xf32>
    %cst_31 = arith.constant dense<0.000000e+00> : vector<8xf32>
    %127 = vector.multi_reduction <add>, %126, %cst_31 [1] : vector<8x8xf32> to vector<8xf32>
    %128 = vector.shape_cast %127 : vector<8xf32> to vector<8x1xf32>
    %129 = tpu.reciprocal %128 {approx = true} : vector<8x1xf32> -> vector<8x1xf32>
    %130 = arith.mulf %128, %129 : vector<8x1xf32>
    %cst_32 = arith.constant 2.000000e+00 : f32
    %131 = vector.broadcast %cst_32 : f32 to vector<8x1xf32>
    %132 = arith.subf %131, %130 : vector<8x1xf32>
    %133 = arith.mulf %129, %132 : vector<8x1xf32>
    %134 = vector.broadcast %133 : vector<8x1xf32> to vector<8x8xf32>
    %135 = arith.mulf %126, %134 : vector<8x8xf32>
    %cst_33 = arith.constant dense<0.000000e+00> : vector<8x32xf32>
    %136 = tpu.matmul %135, %5, %cst_33 {dimension_numbers = #tpu.dot_dimension_numbers<[1], [0], [0], [1], [0, 0, 1, 1], [], []>} : vector<8x8xf32>, vector<8x32xf32>, vector<8x32xf32> -> vector<8x32xf32>
    %c0_34 = arith.constant 0 : index
    %c0_35 = arith.constant 0 : index
    %c0_36 = arith.constant 0 : index
    %137 = vector.load %arg6[%c0_34, %c0_35, %c0_36] : memref<1x8x32xf32, #tpu.memory_space<vmem>>, vector<1x8x32xf32>
    %138 = vector.shape_cast %137 : vector<1x8x32xf32> to vector<8x32xf32>
    %139 = vector.shape_cast %136 : vector<8x32xf32> to vector<1x8x32xf32>
    tpu.vector_store %arg6[%c0_34, %c0_35, %c0_36], %139 {strides = array<i32>} : memref<1x8x32xf32, #tpu.memory_space<vmem>>, vector<1x8x32xf32>,
    return
  }
  func.func @transform_0(%arg0: i32, %arg1: i32) -> (i32, i32, i32) {
    %c0_i32 = arith.constant 0 : i32
    %c0_i32_0 = arith.constant 0 : i32
    return %arg0, %arg1, %c0_i32 : i32, i32, i32
  }
  func.func @transform_1(%arg0: i32, %arg1: i32) -> (i32, i32, i32) {
    %c0_i32 = arith.constant 0 : i32
    %c0_i32_0 = arith.constant 0 : i32
    %c0_i32_1 = arith.constant 0 : i32
    return %arg0, %c0_i32, %c0_i32_0 : i32, i32, i32
  }
  func.func @transform_2(%arg0: i32, %arg1: i32) -> (i32, i32, i32) {
    %c0_i32 = arith.constant 0 : i32
    %c0_i32_0 = arith.constant 0 : i32
    %c0_i32_1 = arith.constant 0 : i32
    return %arg0, %c0_i32, %c0_i32_0 : i32, i32, i32
  }
  func.func @transform_3(%arg0: i32, %arg1: i32) -> (i32, i32) {
    %c0_i32 = arith.constant 0 : i32
    %c0_i32_0 = arith.constant 0 : i32
    %c0_i32_1 = arith.constant 0 : i32
    return %c0_i32, %c0_i32_0 : i32, i32
  }
  func.func @transform_4(%arg0: i32, %arg1: i32) -> (i32, i32, i32) {
    %c0_i32 = arith.constant 0 : i32
    %c0_i32_0 = arith.constant 0 : i32
    return %arg0, %arg1, %c0_i32 : i32, i32, i32
  }
}

</mosaic_0001>

<llo_original>
// kernel: tpu_custom_call.1
$region0: #{tpu_custom_call.1}
  #allocation0 [shape = 'u32[]', space=smem, size = 0x4, offset = 0x4, fixed_abs, tag = 'smem constant byte address 0x4 - core index']
  #allocation1 [shape = 'u32[144,128]{1,0:T(1,128)}', space=vmem, size = 0x12000, scoped, tag = 'internal scratch']
  %s0 = inlined_call_operand.vmem [shape: f32[2,8,32], index: 0, kind: input, shape index: {}]
  %s1 = inlined_call_operand.vmem [shape: f32[2,8,32], index: 1, kind: input, shape index: {}]
  %s2 = inlined_call_operand.hbm [shape: f32[2,8,32], index: 2, kind: input, shape index: {}]
  %s3 = inlined_call_operand.vmem [shape: f32[32,8], index: 3, kind: input, shape index: {}]
  %s4 = inlined_call_operand.hbm [shape: f32[2,8,32], index: 4, kind: output, shape index: {}]
  %s5 = sld [smem:[#allocation0]]
  $region53: #{tpu_custom_call.1} parent=0
    _
  %s7 = ssub.s32 1, %s5
  %s8 = scalar_select 0, %s7, %s5
  $region1: #{tpu_custom_call.1} parent=0
    #allocation2 [shape = 'u8[8192]{0}', space=vmem, size = 0x2000, scoped, tag = 'input window, operand 2']
    #allocation3 [shape = 's32[2]{0}', space=sflag, size = 0x8, scoped, tag = 'scoped memory for tpu_custom_call.1']
    #allocation4 [shape = 's32[2]{0}', space=sflag, size = 0x8, scoped, tag = 'scoped memory for tpu_custom_call.1']
    #allocation5 [shape = 'u8[8192]{0}', space=vmem, size = 0x2000, scoped, tag = 'output window, operand 0']
    %9 = vsyncpa [#allocation3], 0
    %s10 = scalar_lea.sflag [#allocation3], 1
    %11 = vsyncpa %s10, 0
    %12 = vsyncpa [#allocation4], 0
    %s13 = scalar_lea.sflag [#allocation4], 1
    %14 = vsyncpa %s13, 0
    loop: start=0, step=1, limit=4
    $region2: #{tpu_custom_call.1} parent=1 // loop_pre_header
      _
    $region3: #{tpu_custom_call.1} parent=1 // loop_header
      %s16 = sphi 0, %s20
      %p17 = scmp.ge.s32.totalorder %s16, 4
      %s23 = sphi 0, %s35
      %s24 = sphi 0, %s31
      %s25 = sphi 0, %s23
      %s26 = sphi 0, %s24
      %s27 = sphi 0, %s25
      %s28 = sphi 0, %s26
      %s40 = sphi 0, %s42
      %s43 = sphi 0, %s40
      %s44 = sphi 0, %s43
      %s60 = sphi 0, %s44
      %s66 = sphi 0, %s68
      %s69 = sphi 0, %s66
      %s70 = sphi 0, %s69
      %s86 = sphi 0, %s70
      %s92 = sphi 0, %s94
      %s95 = sphi 0, %s92
      %s96 = sphi 0, %s95
      %s112 = sphi 0, %s96
      %s116 = sphi 0, %s116
      %s118 = sphi 0, %s116
      %s119 = sphi 0, %s118
      %s133 = sphi 0, %s119
      %s141 = sphi 0, %s143
      %s144 = sphi 0, %s141
      %s145 = sphi 0, %s144
      %s161 = sphi 0, %s145
    $region4: #{tpu_custom_call.1} parent=1 // loop_header_branch
      %19 = sbr.rel (%p17) target = $region8
    $region5: #{tpu_custom_call.1} parent=1 // loop_body
      %s21 = ssub.s32 %s16, 1
      %s22 = ssub.s32 %s16, 2
      %s29 = sadd.s32 1, %s24
      %p30 = scmp.ge.s32.totalorder %s29, 1
      %s31 = scalar_select %p30, 0, %s29
      %s32 = sadd.s32 1, %s23
      %s33 = scalar_select %p30, %s32, %s23
      %p34 = scmp.ge.s32.totalorder %s33, 2
      %s35 = scalar_select %p34, 0, %s33
      %s36 = ssub.s32 %s23, %s35
      %s37 = ssub.s32 %s24, %s31
      %s38 = sor.u32 %s36, %s37
      %p39 = scmp.eq.s32.totalorder %s38, 0
      %s41 = sadd.s32 %s40, 1
      %s42 = scalar_select %p39, %s40, %s41
      %p45 = pneg %p39
      %p46 = scmp.eq.s32.totalorder %s16, 1
      %p47 = por %p45, %p46
      %p48 = scmp.ne.s32.totalorder %s40, %s43
      %p49 = scmp.eq.s32.totalorder %s16, 0
      %p50 = por %p48, %p49
      %p51 = scmp.ne.s32.totalorder %s40, %s43
      %p52 = scmp.eq.s32.totalorder %s21, 1
      %p53 = por %p51, %p52
      %p54 = scmp.ne.s32.totalorder %s43, %s44
      %p55 = scmp.eq.s32.totalorder %s21, 0
      %p56 = por %p54, %p55
      %p57 = scmp.ne.s32.totalorder %s43, %s44
      %p58 = scmp.eq.s32.totalorder %s22, 1
      %p59 = por %p57, %p58
      %p61 = scmp.ne.s32.totalorder %s44, %s60
      %p62 = scmp.eq.s32.totalorder %s22, 0
      %p63 = por %p61, %p62
      %s64 = ssub.s32 %s23, %s35
      %p65 = scmp.eq.s32.totalorder %s64, 0
      %s67 = sadd.s32 %s66, 1
      %s68 = scalar_select %p65, %s66, %s67
      %p71 = pneg %p65
      %p72 = scmp.eq.s32.totalorder %s16, 1
      %p73 = por %p71, %p72
      %p74 = scmp.ne.s32.totalorder %s66, %s69
      %p75 = scmp.eq.s32.totalorder %s16, 0
      %p76 = por %p74, %p75
      %p77 = scmp.ne.s32.totalorder %s66, %s69
      %p78 = scmp.eq.s32.totalorder %s21, 1
      %p79 = por %p77, %p78
      %p80 = scmp.ne.s32.totalorder %s69, %s70
      %p81 = scmp.eq.s32.totalorder %s21, 0
      %p82 = por %p80, %p81
      %p83 = scmp.ne.s32.totalorder %s69, %s70
      %p84 = scmp.eq.s32.totalorder %s22, 1
      %p85 = por %p83, %p84
      %p87 = scmp.ne.s32.totalorder %s70, %s86
      %p88 = scmp.eq.s32.totalorder %s22, 0
      %p89 = por %p87, %p88
      %s90 = ssub.s32 %s23, %s35
      %p91 = scmp.eq.s32.totalorder %s90, 0
      %s93 = sadd.s32 %s92, 1
      %s94 = scalar_select %p91, %s92, %s93
      %p97 = pneg %p91
      %p98 = scmp.eq.s32.totalorder %s16, 1
      %p99 = por %p97, %p98
      %p100 = scmp.ne.s32.totalorder %s92, %s95
      %p101 = scmp.eq.s32.totalorder %s16, 0
      %p102 = por %p100, %p101
      %p103 = scmp.ne.s32.totalorder %s92, %s95
      %p104 = scmp.eq.s32.totalorder %s21, 1
      %p105 = por %p103, %p104
      %p106 = scmp.ne.s32.totalorder %s95, %s96
      %p107 = scmp.eq.s32.totalorder %s21, 0
      %p108 = por %p106, %p107
      %p109 = scmp.ne.s32.totalorder %s95, %s96
      %p110 = scmp.eq.s32.totalorder %s22, 1
      %p111 = por %p109, %p110
      %p113 = scmp.ne.s32.totalorder %s96, %s112
      %p114 = scmp.eq.s32.totalorder %s22, 0
      %p115 = por %p113, %p114
      %s117 = sadd.s32 %s116, 1
      %p120 = scmp.eq.s32.totalorder %s16, 1
      %p121 = scmp.ne.s32.totalorder %s116, %s118
      %p122 = scmp.eq.s32.totalorder %s16, 0
      %p123 = por %p121, %p122
      %p124 = scmp.ne.s32.totalorder %s116, %s118
      %p125 = scmp.eq.s32.totalorder %s21, 1
      %p126 = por %p124, %p125
      %p127 = scmp.ne.s32.totalorder %s118, %s119
      %p128 = scmp.eq.s32.totalorder %s21, 0
      %p129 = por %p127, %p128
      %p130 = scmp.ne.s32.totalorder %s118, %s119
      %p131 = scmp.eq.s32.totalorder %s22, 1
      %p132 = por %p130, %p131
      %p134 = scmp.ne.s32.totalorder %s119, %s133
      %p135 = scmp.eq.s32.totalorder %s22, 0
      %p136 = por %p134, %p135
      %s137 = ssub.s32 %s23, %s35
      %s138 = ssub.s32 %s24, %s31
      %s139 = sor.u32 %s137, %s138
      %p140 = scmp.eq.s32.totalorder %s139, 0
      %s142 = sadd.s32 %s141, 1
      %s143 = scalar_select %p140, %s141, %s142
      %p146 = pneg %p140
      %p147 = scmp.eq.s32.totalorder %s16, 1
      %p148 = por %p146, %p147
      %p149 = scmp.ne.s32.totalorder %s141, %s144
      %p150 = scmp.eq.s32.totalorder %s16, 0
      %p151 = por %p149, %p150
      %p152 = scmp.ne.s32.totalorder %s141, %s144
      %p153 = scmp.eq.s32.totalorder %s21, 1
      %p154 = por %p152, %p153
      %p155 = scmp.ne.s32.totalorder %s144, %s145
      %p156 = scmp.eq.s32.totalorder %s21, 0
      %p157 = por %p155, %p156
      %p158 = scmp.ne.s32.totalorder %s144, %s145
      %p159 = scmp.eq.s32.totalorder %s22, 1
      %p160 = por %p158, %p159
      %p162 = scmp.ne.s32.totalorder %s145, %s161
      %p163 = scmp.eq.s32.totalorder %s22, 0
      %p164 = por %p162, %p163
      %p165 = scmp.le.s32.totalorder 1, %s16
      %p166 = scmp.lt.s32.totalorder %s16, 3
      %p167 = pnand %p165, %p166
      %p168 = pneg %p167
      // Predicated region
      $region9: #{tpu_custom_call.1} parent=5 // pred_check
        _
      $region10: #{tpu_custom_call.1} parent=5 // pred_check_branch
        %170 = sbr.rel (%p167) target = $region12
      $region11: #{tpu_custom_call.1} parent=5 // pred_region
        %s171 = ssub.s32 %s16, 1
        // Predicated region
        $region13: #{tpu_custom_call.1} parent=11 // pred_check
          %p172 = pneg %p129
        $region14: #{tpu_custom_call.1} parent=11 // pred_check_branch
          %174 = sbr.rel (%p172) target = $region16
        $region15: #{tpu_custom_call.1} parent=11 // pred_region
          _
        $region16: #{tpu_custom_call.1} parent=11 // pred_fallthru
          _
      $region12: #{tpu_custom_call.1} parent=5 // pred_fallthru
        _
      %p175 = scmp.lt.s32.totalorder %s16, 2
      // Predicated region
      $region17: #{tpu_custom_call.1} parent=5 // pred_check
        %p176 = pneg %p175
      $region18: #{tpu_custom_call.1} parent=5 // pred_check_branch
        %178 = sbr.rel (%p176) target = $region20
      $region19: #{tpu_custom_call.1} parent=5 // pred_region
        // Predicated region
        $region21: #{tpu_custom_call.1} parent=19 // pred_check
          %p179 = pneg %p50
        $region22: #{tpu_custom_call.1} parent=19 // pred_check_branch
          %181 = sbr.rel (%p179) target = $region24
        $region23: #{tpu_custom_call.1} parent=19 // pred_region
          %p182 = scmp.lt.s32.totalorder %s23, 1
          %s183 = scalar_select %p182, %s23, 1
          %p184 = scmp.lt.s32.totalorder %s24, 0
          %s185 = scalar_select %p184, %s24, 0
          %s186 = sadd.s32 %s185, %s183
          %s187 = smul.addr %s186, 8
          %s188 = scalar_lea.vmem %s0, %s187
        $region24: #{tpu_custom_call.1} parent=19 // pred_fallthru
          _
        // Predicated region
        $region25: #{tpu_custom_call.1} parent=19 // pred_check
          %p189 = pneg %p76
        $region26: #{tpu_custom_call.1} parent=19 // pred_check_branch
          %191 = sbr.rel (%p189) target = $region28
        $region27: #{tpu_custom_call.1} parent=19 // pred_region
          %p192 = scmp.lt.s32.totalorder %s23, 1
          %s193 = scalar_select %p192, %s23, 1
          %s194 = smul.addr %s193, 8
          %s195 = scalar_lea.vmem %s1, %s194
        $region28: #{tpu_custom_call.1} parent=19 // pred_fallthru
          _
        // Predicated region
        $region29: #{tpu_custom_call.1} parent=19 // pred_check
          %p196 = pneg %p102
        $region30: #{tpu_custom_call.1} parent=19 // pred_check_branch
          %198 = sbr.rel (%p196) target = $region32
        $region31: #{tpu_custom_call.1} parent=19 // pred_region
          %s199 = sand.u32 %s92, 1
          %s200 = scalar_lea.sflag [#allocation3], %s199
          %s201 = sand.u32 %s92, 1
          %s202 = smul.addr %s201, 8
          %s203 = scalar_lea.vmem [#allocation2], %s202
          %s205 = ssub.s32 128, 128
          %206 = vsyncadd %s200, %s205
          %s207 = smul.addr %s23, 128
          %s208 = scalar_lea.hbm %s2, %s207
          %s210 = sshll.u32 %s203, 4
          %s211 = int_to_ptr.vmem [resolvable:$true] %s210
          %213 = dma.hbm_to_vmem [thread:$0]  %s208, 128, %s211, %s200
        $region32: #{tpu_custom_call.1} parent=19 // pred_fallthru
          _
      $region20: #{tpu_custom_call.1} parent=5 // pred_fallthru
        _
      %p214 = scmp.le.s32.totalorder 1, %s16
      %p215 = scmp.lt.s32.totalorder %s16, 3
      %p216 = pnand %p214, %p215
      %p217 = pneg %p216
      // Predicated region
      $region33: #{tpu_custom_call.1} parent=5 // pred_check
        _
      $region34: #{tpu_custom_call.1} parent=5 // pred_check_branch
        %219 = sbr.rel (%p216) target = $region36
      $region35: #{tpu_custom_call.1} parent=5 // pred_region
        %s220 = ssub.s32 %s16, 1
        %s221 = sand.u32 %s95, 1
        %s222 = scalar_lea.sflag [#allocation3], %s221
        %s223 = sand.u32 %s95, 1
        %s224 = smul.addr %s223, 8
        %s225 = scalar_lea.vmem [#allocation2], %s224
        // Predicated region
        $region37: #{tpu_custom_call.1} parent=35 // pred_check
          %p226 = pneg %p108
        $region38: #{tpu_custom_call.1} parent=35 // pred_check_branch
          %228 = sbr.rel (%p226) target = $region40
        $region39: #{tpu_custom_call.1} parent=35 // pred_region
          %229 = dma.done %s222, 128
        $region40: #{tpu_custom_call.1} parent=35 // pred_fallthru
          _
        %p230 = scmp.lt.s32.totalorder %s25, 1
        %s231 = scalar_select %p230, %s25, 1
        %p232 = scmp.lt.s32.totalorder %s26, 0
        %s233 = scalar_select %p232, %s26, 0
        %s234 = sadd.s32 %s233, %s231
        %s235 = smul.addr %s234, 8
        %s236 = scalar_lea.vmem %s0, %s235
        %p237 = pneg %p56
        %p238 = pneg %p53
        %p239 = scmp.lt.s32.totalorder %s25, 1
        %s240 = scalar_select %p239, %s25, 1
        %s241 = smul.addr %s240, 8
        %s242 = scalar_lea.vmem %s1, %s241
        %p243 = pneg %p82
        %p244 = pneg %p79
        %s245 = sand.u32 %s95, 1
        %s246 = scalar_lea.sflag [#allocation3], %s245
        %s247 = sand.u32 %s95, 1
        %s248 = smul.addr %s247, 8
        %s249 = scalar_lea.vmem [#allocation2], %s248
        %p250 = pneg %p108
        %p251 = pneg %p105
        %p252 = pneg %p129
        %p253 = pneg %p126
        %p254 = pneg %p157
        %p255 = pneg %p154
        %s256 = sand.u32 %s144, 1
        %s257 = scalar_lea.sflag [#allocation4], %s256
        %s258 = sand.u32 %s144, 1
        %s259 = smul.addr %s258, 8
        %s260 = scalar_lea.vmem [#allocation5], %s259
        %p261 = scmp.lt.s32.totalorder %s25, 1
        %s262 = scalar_select %p261, %s25, 1
        %p263 = scmp.lt.s32.totalorder %s26, 0
        %s264 = scalar_select %p263, %s26, 0
        %s265 = sadd.s32 %s264, %s262
        %s266 = smul.addr %s265, 8
        %s267 = scalar_lea.vmem %s0, %s266
        %p268 = scmp.lt.s32.totalorder %s25, 1
        %s269 = scalar_select %p268, %s25, 1
        %s270 = smul.addr %s269, 8
        %s271 = scalar_lea.vmem %s1, %s270
        %v272 = vld [vmem:[%s267] sm:$0xff]
        %v273 = vld [vmem:[%s271] sm:$0xff]
        %v274 = vld [vmem:[%s225] sm:$0xff]
        %v275 = vld [vmem:[%s3] sm:$0xff]
        %v276 = vld [vmem:[%s3 + $0x8] sm:$0xff]
        %v277 = vld [vmem:[%s3 + $0x10] sm:$0xff]
        %v278 = vld [vmem:[%s3 + $0x18] sm:$0xff]
        %v279 = vmul.f32 %v272, 0.17677669
        %vm280 = vcmask 261120
        %v282 = vsel %vm280, %v279, 0
        %v285 = vsel %vm280, %v273, 0
        %287 = vmatprep.subr.mxu0 0.0
        %288 = vmatpush1.xpose.msra.mxu0 %v285
        %289 = vmatprep.subr.mxu0 0.0
        %290 = vmatpush1.xpose.msra.mxu0 0.0
        %291 = vmatprep.subr.mxu0 0.0
        %292 = vmatpush1.xpose.msra.mxu0 0.0
        %293 = vmatprep.subr.mxu0 0.0
        %294 = vmatpush1.xpose.msra.mxu0 0.0
        %295 = vmatprep.subr.mxu0 0.0
        %296 = vmatpush1.xpose.msra.mxu0 0.0
        %297 = vmatprep.subr.mxu0 0.0
        %298 = vmatpush1.xpose.msra.mxu0 0.0
        %299 = vmatprep.subr.mxu0 0.0
        %300 = vmatpush1.xpose.msra.mxu0 0.0
        %301 = vmatprep.subr.mxu0 0.0
        %302 = vmatpush1.xpose.msra.mxu0 0.0
        %303 = vmatprep.subr.mxu0 0.0
        %304 = vmatpush1.xpose.msra.mxu0 0.0
        %305 = vmatprep.subr.mxu0 0.0
        %306 = vmatpush1.xpose.msra.mxu0 0.0
        %307 = vmatprep.subr.mxu0 0.0
        %308 = vmatpush1.xpose.msra.mxu0 0.0
        %309 = vmatprep.subr.mxu0 0.0
        %310 = vmatpush1.xpose.msra.mxu0 0.0
        %311 = vmatprep.subr.mxu0 0.0
        %312 = vmatpush1.xpose.msra.mxu0 0.0
        %313 = vmatprep.subr.mxu0 0.0
        %314 = vmatpush1.xpose.msra.mxu0 0.0
        %315 = vmatprep.subr.mxu0 0.0
        %316 = vmatpush1.xpose.msra.mxu0 0.0
        %317 = vmatprep.subr.mxu0 0.0
        %318 = vmatpush1.xpose.msra.mxu0 0.0
        %319 = vmatprep.subr.mxu0 0.0
        %320 = vmatpush1.xpose.msra.mxu0 0.0
        %321 = vmatprep.subr.mxu0 0.0
        %322 = vmatpush1.xpose.msra.mxu0 0.0
        %323 = vmatprep.subr.mxu0 0.0
        %324 = vmatpush1.xpose.msra.mxu0 0.0
        %325 = vmatprep.subr.mxu0 0.0
        %326 = vmatpush1.xpose.msra.mxu0 0.0
        %327 = vmatprep.subr.mxu0 0.0
        %328 = vmatpush1.xpose.msra.mxu0 0.0
        %329 = vmatprep.subr.mxu0 0.0
        %330 = vmatpush1.xpose.msra.mxu0 0.0
        %331 = vmatprep.subr.mxu0 0.0
        %332 = vmatpush1.xpose.msra.mxu0 0.0
        %333 = vmatprep.subr.mxu0 0.0
        %334 = vmatpush1.xpose.msra.mxu0 0.0
        %335 = vmatprep.subr.mxu0 0.0
        %336 = vmatpush1.xpose.msra.mxu0 0.0
        %337 = vmatprep.subr.mxu0 0.0
        %338 = vmatpush1.xpose.msra.mxu0 0.0
        %339 = vmatprep.subr.mxu0 0.0
        %340 = vmatpush1.xpose.msra.mxu0 0.0
        %341 = vmatprep.subr.mxu0 0.0
        %342 = vmatpush1.xpose.msra.mxu0 0.0
        %343 = vmatprep.subr.mxu0 0.0
        %344 = vmatpush1.xpose.msra.mxu0 0.0
        %345 = vmatprep.subr.mxu0 0.0
        %346 = vmatpush1.xpose.msra.mxu0 0.0
        %347 = vmatprep.subr.mxu0 0.0
        %348 = vmatpush1.xpose.msra.mxu0 0.0
        %349 = vmatprep.subr.mxu0 0.0
        %350 = vmatpush1.xpose.msra.mxu0 0.0
        %351 = vmatprep.mubr.f32.mxu0 0.0
        %352 = vmatmul.mubr.f32.gmra.mrb[0].mxu0 %v282
        %v353 = vpop.f32.mrb[0].mxu0
        %v354 = vadd.f32 0.0, %v353
        %v355 = vpop.f32.mrb[0].mxu0
        %356 = vdwg.mxu0
        %v357 = vmul.f32 %v354, 0.5
        %v358 = vtanh.pop %v357
        %v359 = vadd.f32 %v358, 1.0
        %v360 = vmul.f32 %v359, 0.5
        %362 = vrot.lane.b32.xlu0 %v360, 127
        %v363 = vpop.permute.xlu0 %362
        %vm365 = vcmask 56320
        %v366 = vsel %vm365, %v363, 0.0
        %v367 = vadd.f32 %v360, %v366
        %369 = vrot.lane.b32.xlu0 %v367, 126
        %v370 = vpop.permute.xlu0 %369
        %vm372 = vcmask 48128
        %v373 = vsel %vm372, %v370, 0.0
        %v374 = vadd.f32 %v367, %v373
        %376 = vrot.lane.b32.xlu0 %v374, 124
        %v377 = vpop.permute.xlu0 %376
        %vm379 = vcmask 31744
        %v380 = vsel %vm379, %v377, 0.0
        %v381 = vadd.f32 %v374, %v380
        %v382 = vmin.f32 %v381, 7.0
        %v384 = vsel %vm280, %v272, 0
        %386 = vmatprep.subr.mxu0 0.0
        %387 = vmatpush1.msra.mxu0 %v275
        %388 = vmatprep.subr.mxu0 0.0
        %389 = vmatpush1.msra.mxu0 %v276
        %390 = vmatprep.subr.mxu0 0.0
        %391 = vmatpush1.msra.mxu0 %v277
        %392 = vmatprep.subr.mxu0 0.0
        %393 = vmatpush1.msra.mxu0 %v278
        %394 = vmatprep.subr.mxu0 0.0
        %395 = vmatpush1.msra.mxu0 0.0
        %396 = vmatprep.subr.mxu0 0.0
        %397 = vmatpush1.msra.mxu0 0.0
        %398 = vmatprep.subr.mxu0 0.0
        %399 = vmatpush1.msra.mxu0 0.0
        %400 = vmatprep.subr.mxu0 0.0
        %401 = vmatpush1.msra.mxu0 0.0
        %402 = vmatprep.subr.mxu0 0.0
        %403 = vmatpush1.msra.mxu0 0.0
        %404 = vmatprep.subr.mxu0 0.0
        %405 = vmatpush1.msra.mxu0 0.0
        %406 = vmatprep.subr.mxu0 0.0
        %407 = vmatpush1.msra.mxu0 0.0
        %408 = vmatprep.subr.mxu0 0.0
        %409 = vmatpush1.msra.mxu0 0.0
        %410 = vmatprep.subr.mxu0 0.0
        %411 = vmatpush1.msra.mxu0 0.0
        %412 = vmatprep.subr.mxu0 0.0
        %413 = vmatpush1.msra.mxu0 0.0
        %414 = vmatprep.subr.mxu0 0.0
        %415 = vmatpush1.msra.mxu0 0.0
        %416 = vmatprep.subr.mxu0 0.0
        %417 = vmatpush1.msra.mxu0 0.0
        %418 = vmatprep.subr.mxu0 0.0
        %419 = vmatpush1.msra.mxu0 0.0
        %420 = vmatprep.subr.mxu0 0.0
        %421 = vmatpush1.msra.mxu0 0.0
        %422 = vmatprep.subr.mxu0 0.0
        %423 = vmatpush1.msra.mxu0 0.0
        %424 = vmatprep.subr.mxu0 0.0
        %425 = vmatpush1.msra.mxu0 0.0
        %426 = vmatprep.subr.mxu0 0.0
        %427 = vmatpush1.msra.mxu0 0.0
        %428 = vmatprep.subr.mxu0 0.0
        %429 = vmatpush1.msra.mxu0 0.0
        %430 = vmatprep.subr.mxu0 0.0
        %431 = vmatpush1.msra.mxu0 0.0
        %432 = vmatprep.subr.mxu0 0.0
        %433 = vmatpush1.msra.mxu0 0.0
        %434 = vmatprep.subr.mxu0 0.0
        %435 = vmatpush1.msra.mxu0 0.0
        %436 = vmatprep.subr.mxu0 0.0
        %437 = vmatpush1.msra.mxu0 0.0
        %438 = vmatprep.subr.mxu0 0.0
        %439 = vmatpush1.msra.mxu0 0.0
        %440 = vmatprep.subr.mxu0 0.0
        %441 = vmatpush1.msra.mxu0 0.0
        %442 = vmatprep.subr.mxu0 0.0
        %443 = vmatpush1.msra.mxu0 0.0
        %444 = vmatprep.subr.mxu0 0.0
        %445 = vmatpush1.msra.mxu0 0.0
        %446 = vmatprep.subr.mxu0 0.0
        %447 = vmatpush1.msra.mxu0 0.0
        %448 = vmatprep.subr.mxu0 0.0
        %449 = vmatpush1.msra.mxu0 0.0
        %450 = vmatprep.mubr.f32.mxu0 0.0
        %451 = vmatmul.mubr.f32.gmra.mrb[0].mxu0 %v384
        %v452 = vpop.f32.mrb[0].mxu0
        %v453 = vadd.f32 0.0, %v452
        %v454 = vpop.f32.mrb[0].mxu0
        %455 = vdwg.mxu0
        %v456 = vfloor.f32 %v382
        %v457 = vsub.f32 %v382, %v456
        %vm458 = vcmp.eq.f32.partialorder %v456, 0.0
        %460 = vset.pattern.permute.xlu0 0
        %461 = vperm.xlu0 %460, %v453
        %v462 = vpop.permute.xlu0 %461
        %v464 = vsel %vm458, %v462, 0.0
        %465 = vset.pattern.permute.xlu0 1
        %466 = vperm.xlu0 %465, %v453
        %v467 = vpop.permute.xlu0 %466
        %v469 = vsel %vm458, %v467, 0.0
        %vm470 = vcmp.eq.f32.partialorder %v456, 1.0
        %v471 = vsel %vm470, %v467, %v464
        %472 = vset.pattern.permute.xlu0 2
        %473 = vperm.xlu0 %472, %v453
        %v474 = vpop.permute.xlu0 %473
        %v476 = vsel %vm470, %v474, %v469
        %vm477 = vcmp.eq.f32.partialorder %v456, 2.0
        %v478 = vsel %vm477, %v474, %v471
        %479 = vset.pattern.permute.xlu0 3
        %480 = vperm.xlu0 %479, %v453
        %v481 = vpop.permute.xlu0 %480
        %v483 = vsel %vm477, %v481, %v476
        %vm484 = vcmp.eq.f32.partialorder %v456, 3.0
        %v485 = vsel %vm484, %v481, %v478
        %486 = vset.pattern.permute.xlu0 4
        %487 = vperm.xlu0 %486, %v453
        %v488 = vpop.permute.xlu0 %487
        %v490 = vsel %vm484, %v488, %v483
        %vm491 = vcmp.eq.f32.partialorder %v456, 4.0
        %v492 = vsel %vm491, %v488, %v485
        %493 = vset.pattern.permute.xlu0 5
        %494 = vperm.xlu0 %493, %v453
        %v495 = vpop.permute.xlu0 %494
        %v497 = vsel %vm491, %v495, %v490
        %vm498 = vcmp.eq.f32.partialorder %v456, 5.0
        %v499 = vsel %vm498, %v495, %v492
        %500 = vset.pattern.permute.xlu0 6
        %501 = vperm.xlu0 %500, %v453
        %v502 = vpop.permute.xlu0 %501
        %v504 = vsel %vm498, %v502, %v497
        %vm505 = vcmp.eq.f32.partialorder %v456, 6.0
        %v506 = vsel %vm505, %v502, %v499
        %507 = vset.pattern.permute.xlu0 7
        %508 = vperm.xlu0 %507, %v453
        %v509 = vpop.permute.xlu0 %508
        %v511 = vsel %vm505, %v509, %v504
        %vm512 = vcmp.eq.f32.partialorder %v456, 7.0
        %v513 = vsel %vm512, %v509, %v506
        %v514 = vsel %vm512, %v509, %v511
        %v515 = vsub.f32 1.0, %v457
        %v516 = vmul.f32 %v515, %v513
        %v517 = vmul.f32 %v457, %v514
        %v518 = vadd.f32 %v516, %v517
        %v519 = vadd.f32 %v354, %v518
        %vm520 = vcmask 64512
        %v521 = vsel %vm520, %v519, -inf
        %522 = vmax.xlane.f32.xlu0 %v521
        %v523 = vpop.xlane.xlu0 %522
        %v524 = vsub.f32 %v519, %v523
        %v525 = vmul.f32 %v524, 1.442695
        %v526 = vpow.pop %v525
        %v527 = vsel %vm520, %v526, 0.0
        %528 = vadd.xlane.f32.xlu0 %v527
        %v529 = vpop.xlane.xlu0 %528
        %v530 = vrcp.pop %v529
        %v531 = vmul.f32 %v529, %v530
        %v532 = vsub.f32 2.0, %v531
        %v533 = vmul.f32 %v530, %v532
        %v534 = vmul.f32 %v526, %v533
        %v536 = vsel %vm520, %v534, 0
        %538 = vmatprep.subr.mxu0 0.0
        %539 = vmatpush1.msra.mxu0 %v274
        %540 = vmatprep.subr.mxu0 0.0
        %541 = vmatpush1.msra.mxu0 0.0
        %542 = vmatprep.subr.mxu0 0.0
        %543 = vmatpush1.msra.mxu0 0.0
        %544 = vmatprep.subr.mxu0 0.0
        %545 = vmatpush1.msra.mxu0 0.0
        %546 = vmatprep.subr.mxu0 0.0
        %547 = vmatpush1.msra.mxu0 0.0
        %548 = vmatprep.subr.mxu0 0.0
        %549 = vmatpush1.msra.mxu0 0.0
        %550 = vmatprep.subr.mxu0 0.0
        %551 = vmatpush1.msra.mxu0 0.0
        %552 = vmatprep.subr.mxu0 0.0
        %553 = vmatpush1.msra.mxu0 0.0
        %554 = vmatprep.subr.mxu0 0.0
        %555 = vmatpush1.msra.mxu0 0.0
        %556 = vmatprep.subr.mxu0 0.0
        %557 = vmatpush1.msra.mxu0 0.0
        %558 = vmatprep.subr.mxu0 0.0
        %559 = vmatpush1.msra.mxu0 0.0
        %560 = vmatprep.subr.mxu0 0.0
        %561 = vmatpush1.msra.mxu0 0.0
        %562 = vmatprep.subr.mxu0 0.0
        %563 = vmatpush1.msra.mxu0 0.0
        %564 = vmatprep.subr.mxu0 0.0
        %565 = vmatpush1.msra.mxu0 0.0
        %566 = vmatprep.subr.mxu0 0.0
        %567 = vmatpush1.msra.mxu0 0.0
        %568 = vmatprep.subr.mxu0 0.0
        %569 = vmatpush1.msra.mxu0 0.0
        %570 = vmatprep.subr.mxu0 0.0
        %571 = vmatpush1.msra.mxu0 0.0
        %572 = vmatprep.subr.mxu0 0.0
        %573 = vmatpush1.msra.mxu0 0.0
        %574 = vmatprep.subr.mxu0 0.0
        %575 = vmatpush1.msra.mxu0 0.0
        %576 = vmatprep.subr.mxu0 0.0
        %577 = vmatpush1.msra.mxu0 0.0
        %578 = vmatprep.subr.mxu0 0.0
        %579 = vmatpush1.msra.mxu0 0.0
        %580 = vmatprep.subr.mxu0 0.0
        %581 = vmatpush1.msra.mxu0 0.0
        %582 = vmatprep.subr.mxu0 0.0
        %583 = vmatpush1.msra.mxu0 0.0
        %584 = vmatprep.subr.mxu0 0.0
        %585 = vmatpush1.msra.mxu0 0.0
        %586 = vmatprep.subr.mxu0 0.0
        %587 = vmatpush1.msra.mxu0 0.0
        %588 = vmatprep.subr.mxu0 0.0
        %589 = vmatpush1.msra.mxu0 0.0
        %590 = vmatprep.subr.mxu0 0.0
        %591 = vmatpush1.msra.mxu0 0.0
        %592 = vmatprep.subr.mxu0 0.0
        %593 = vmatpush1.msra.mxu0 0.0
        %594 = vmatprep.subr.mxu0 0.0
        %595 = vmatpush1.msra.mxu0 0.0
        %596 = vmatprep.subr.mxu0 0.0
        %597 = vmatpush1.msra.mxu0 0.0
        %598 = vmatprep.subr.mxu0 0.0
        %599 = vmatpush1.msra.mxu0 0.0
        %600 = vmatprep.subr.mxu0 0.0
        %601 = vmatpush1.msra.mxu0 0.0
        %602 = vmatprep.mubr.f32.mxu0 0.0
        %603 = vmatmul.mubr.f32.gmra.mrb[0].mxu0 %v536
        %v604 = vpop.f32.mrb[0].mxu0
        %v605 = vadd.f32 0.0, %v604
        %v606 = vpop.f32.mrb[0].mxu0
        %607 = vdwg.mxu0
        %608 = vst.msk [vmem:[%s260] sm:$0xff] %vm280, %v605
        %s609 = sand.u32 %s144, 1
        %s610 = scalar_lea.sflag [#allocation4], %s609
        %s611 = sand.u32 %s144, 1
        %s612 = smul.addr %s611, 8
        %s613 = scalar_lea.vmem [#allocation5], %s612
        // Predicated region
        $region41: #{tpu_custom_call.1} parent=35 // pred_check
          %p614 = pneg %p154
        $region42: #{tpu_custom_call.1} parent=35 // pred_check_branch
          %616 = sbr.rel (%p614) target = $region44
        $region43: #{tpu_custom_call.1} parent=35 // pred_region
          %s618 = ssub.s32 128, 128
          %619 = vsyncadd %s610, %s618
          %s620 = sadd.s32 %s26, %s25
          %s621 = smul.addr %s620, 128
          %s622 = scalar_lea.hbm %s4, %s621
          %s624 = sshll.u32 %s613, 4
          %s625 = int_to_ptr.vmem [resolvable:$true] %s624
          %627 = dma.vmem_to_hbm [thread:$0]  %s625, 128, %s622, %s610
        $region44: #{tpu_custom_call.1} parent=35 // pred_fallthru
          _
      $region36: #{tpu_custom_call.1} parent=5 // pred_fallthru
        _
      %p628 = scmp.le.s32.totalorder 2, %s16
      // Predicated region
      $region45: #{tpu_custom_call.1} parent=5 // pred_check
        %p629 = pneg %p628
      $region46: #{tpu_custom_call.1} parent=5 // pred_check_branch
        %631 = sbr.rel (%p629) target = $region48
      $region47: #{tpu_custom_call.1} parent=5 // pred_region
        %s632 = ssub.s32 %s16, 2
        // Predicated region
        $region49: #{tpu_custom_call.1} parent=47 // pred_check
          %p633 = pneg %p160
        $region50: #{tpu_custom_call.1} parent=47 // pred_check_branch
          %635 = sbr.rel (%p633) target = $region52
        $region51: #{tpu_custom_call.1} parent=47 // pred_region
          %s636 = sand.u32 %s145, 1
          %s637 = scalar_lea.sflag [#allocation4], %s636
          %s638 = sand.u32 %s145, 1
          %s639 = smul.addr %s638, 8
          %s640 = scalar_lea.vmem [#allocation5], %s639
          %641 = dma.done %s637, 128
        $region52: #{tpu_custom_call.1} parent=47 // pred_fallthru
          _
      $region48: #{tpu_custom_call.1} parent=5 // pred_fallthru
        _
    $region6: #{tpu_custom_call.1} parent=1 // loop_footer
      %s20 = sadd.s32 1, %s16
    $region7: #{tpu_custom_call.1} parent=1 // loop_footer_branch
      %15 = sbr.rel target = $region3
    $region8: #{tpu_custom_call.1} parent=1 // loop_exit
      _
    %642 = vsyncpa [#allocation3], 1
    %s643 = scalar_lea.sflag [#allocation3], 1
    %644 = vsyncpa %s643, 1
    %645 = vsyncpa [#allocation4], 1
    %s646 = scalar_lea.sflag [#allocation4], 1
    %647 = vsyncpa %s646, 1

</llo_original>
